<compile_context>
chip_gen: v6e
topology: v6e:2x2x1
jax: 0.10.0
libtpu: 0.0.40
codegen_flags: <defaults>
</compile_context>

<pallas_src>
import functools

import jax
import jax.numpy as jnp
from jax.experimental import pallas as pl
from jax.experimental.pallas import tpu as pltpu


def _layernorm_kernel(x_ref, alpha_ref, bias_ref, o_ref, *, eps: float):
    # x_ref: (ROW_TILE, F) block; alpha/bias: (1, F)
    x = x_ref[...].astype(jnp.float32)
    f = x.shape[-1]

    # One-pass statistics: both lane reductions issue on data available up
    # front instead of sum -> mean -> diff -> sum(diff^2).
    s1 = jnp.sum(x, axis=-1, keepdims=True)
    s2 = jnp.sum(x * x, axis=-1, keepdims=True)
    mean = s1 * jnp.float32(1.0 / f)
    # torch.Tensor.std is unbiased (Bessel's correction): divide by (F - 1)
    var = (s2 - s1 * mean) * jnp.float32(1.0 / (f - 1))
    std = jnp.sqrt(var)

    # Reciprocal on the narrow (ROW_TILE, 1) column; per-element work after
    # this point is multiply/add only.  approx=False keeps parity with the
    # exact-divide PyTorch reference.
    inv = pl.reciprocal(std + jnp.float32(eps), approx=False)

    alpha = alpha_ref[...].astype(jnp.float32)
    bias = bias_ref[...].astype(jnp.float32)
    scale = alpha * inv                      # (ROW_TILE, F) broadcasted scale
    o_ref[...] = ((x - mean) * scale + bias).astype(o_ref.dtype)


def _pick_row_tile(rows: int, features: int, itemsize: int) -> int:
    # Budget ~16 MiB for the double-buffered in+out pipeline tiles
    # (2 in + 2 out buffers, sized as f32 to cover the in-kernel upcast and
    # temporaries).  This stays within v7x's 64 MiB physical VMEM while
    # letting v5e/v6e run 512-1024 row tiles for typical d_model.
    budget_bytes = 16 << 20
    per_row_bytes = 4 * features * max(4, itemsize)  # 4 buffers, f32-sized
    row_tile = budget_bytes // max(per_row_bytes, 1)
    row_tile = max(8, min(1024, row_tile))
    row_tile = (row_tile // 8) * 8
    # No point in a tile larger than the (sublane-rounded) total row count.
    rows_rounded = max(8, ((rows + 7) // 8) * 8)
    return min(row_tile, rows_rounded)


def layer_norm_pallas(x, alpha, bias, *, eps: float = 1e-6, row_tile: int | None = None):
    """LayerNormalization over the last axis of x (any leading dims)."""
    orig_shape = x.shape
    features = orig_shape[-1]
    rows = 1
    for d in orig_shape[:-1]:
        rows *= d
    x2 = x.reshape(rows, features)

    if row_tile is None:
        row_tile = _pick_row_tile(rows, features, jnp.dtype(x.dtype).itemsize)
    else:
        row_tile = max(8, (row_tile // 8) * 8)

    alpha2 = alpha.reshape(1, features)
    bias2 = bias.reshape(1, features)

    # cdiv grid: the last block may be partial; Pallas masks the tail writes
    # and garbage OOB rows are harmless because the norm is strictly row-wise.
    grid = (pl.cdiv(rows, row_tile),)

    # TODO(synk): for production d_model < 128 the output stores are masked
    # (lane-sparse); folding multiple rows into the lane dim would fix that.
    out = pl.pallas_call(
        functools.partial(_layernorm_kernel, eps=eps),
        out_shape=jax.ShapeDtypeStruct((rows, features), x.dtype),
        grid_spec=pltpu.PrefetchScalarGridSpec(
            num_scalar_prefetch=0,
            grid=grid,
            in_specs=[
                pl.BlockSpec((row_tile, features), lambda i: (i, 0)),
                pl.BlockSpec((1, features), lambda i: (0, 0)),
                pl.BlockSpec((1, features), lambda i: (0, 0)),
            ],
            out_specs=pl.BlockSpec((row_tile, features), lambda i: (i, 0)),
        ),
        compiler_params=pltpu.CompilerParams(
            dimension_semantics=("parallel",),
            vmem_limit_bytes=48 << 20,
        ),
    )(x2, alpha2, bias2)

    return out.reshape(orig_shape)


def encoder_forward(x, mask, alpha, bias, layers=(), *, eps: float = 1e-6):
    """Encoder.forward: apply each layer (plain-JAX callables), then LayerNorm."""
    # TODO(synk): the reference `layers` ModuleList contents are not defined in
    # the given source; layers are treated as caller-supplied callables.
    # If the final layer is also a Pallas/JAX kernel you control, fuse this
    # LayerNorm into its output epilogue to save one full HBM read+write of x.
    for layer in layers:
        x = layer(x, mask)
    return layer_norm_pallas(x, alpha, bias, eps=eps)


def _reference_layernorm(x, alpha, bias, eps=1e-6):
    # Pure-JAX reference mirroring the PyTorch math (unbiased std, eps on std).
    mean = jnp.mean(x, axis=-1, keepdims=True)
    diff = x - mean
    var = jnp.sum(diff * diff, axis=-1, keepdims=True) / (x.shape[-1] - 1)
    std = jnp.sqrt(var)
    return alpha * diff / (std + eps) + bias


if __name__ == "__main__":
    key = jax.random.PRNGKey(0)

    # Main test: small, lane-dense features (multiple of 128).
    batch, seq, features = 2, 8, 128
    k1, k2 = jax.random.split(key, 2)
    x = jax.random.normal(k1, (batch, seq, features), dtype=jnp.float32)
    mask = jnp.ones((batch, 1, seq, seq), dtype=jnp.float32)  # unused (no layers)

    # Deterministic parameters matching LayerNormalization.__init__:
    #   alpha = ones(features), bias = zeros(features)
    alpha = jnp.ones((features,), dtype=jnp.float32)
    bias = jnp.zeros((features,), dtype=jnp.float32)

    out = encoder_forward(x, mask, alpha, bias, layers=())
    out = jax.block_until_ready(out)
    ref = _reference_layernorm(x, alpha, bias)
    assert out.shape == x.shape
    assert jnp.allclose(out, ref, atol=1e-4, rtol=1e-4), "mismatch vs reference"

    # Tail test: rows not a multiple of the row tile (partial last block).
    x_tail = jax.random.normal(k2, (3, 5, features), dtype=jnp.float32)
    out_tail = jax.block_until_ready(
        layer_norm_pallas(x_tail, alpha, bias)
    )
    ref_tail = _reference_layernorm(x_tail, alpha, bias)
    assert out_tail.shape == x_tail.shape
    assert jnp.allclose(out_tail, ref_tail, atol=1e-4, rtol=1e-4), "tail mismatch"

    print("KERNEL_OK")
</pallas_src>

<mosaic_0001>
module attributes {stable_mosaic.version = 11 : i64} {
  func.func @_layernorm_kernel(%arg0: i32, %arg1: memref<16x128xf32, #tpu.memory_space<vmem>>, %arg2: memref<1x128xf32, #tpu.memory_space<vmem>>, %arg3: memref<1x128xf32, #tpu.memory_space<vmem>>, %arg4: memref<16x128xf32, #tpu.memory_space<vmem>>) attributes {dimension_semantics = [#tpu.dimension_semantics<parallel>], iteration_bounds = array<i64: 1>, scalar_prefetch = 0 : i64, scratch_operands = 0 : i64, tpu.core_type = #tpu.core_type<tc>, window_params = [{transform_indices = @transform_0, window_bounds = array<i64: 16, 128>}, {pipeline_mode = #tpu.pipeline_mode<synchronous>, transform_indices = @transform_1, window_bounds = array<i64: 1, 128>}, {pipeline_mode = #tpu.pipeline_mode<synchronous>, transform_indices = @transform_2, window_bounds = array<i64: 1, 128>}, {transform_indices = @transform_3, window_bounds = array<i64: 16, 128>}]} {
    %c0 = arith.constant 0 : index
    %c0_0 = arith.constant 0 : index
    %0 = vector.load %arg1[%c0, %c0_0] : memref<16x128xf32, #tpu.memory_space<vmem>>, vector<16x128xf32>
    %cst = arith.constant dense<0.000000e+00> : vector<16xf32>
    %1 = vector.multi_reduction <add>, %0, %cst [1] : vector<16x128xf32> to vector<16xf32>
    %2 = vector.shape_cast %1 : vector<16xf32> to vector<16x1xf32>
    %3 = arith.mulf %0, %0 : vector<16x128xf32>
    %cst_1 = arith.constant dense<0.000000e+00> : vector<16xf32>
    %4 = vector.multi_reduction <add>, %3, %cst_1 [1] : vector<16x128xf32> to vector<16xf32>
    %5 = vector.shape_cast %4 : vector<16xf32> to vector<16x1xf32>
    %cst_2 = arith.constant 7.812500e-03 : f32
    %6 = vector.broadcast %cst_2 : f32 to vector<16x1xf32>
    %7 = arith.mulf %2, %6 : vector<16x1xf32>
    %8 = arith.mulf %2, %7 : vector<16x1xf32>
    %9 = arith.subf %5, %8 : vector<16x1xf32>
    %cst_3 = arith.constant 0.00787401571 : f32
    %10 = vector.broadcast %cst_3 : f32 to vector<16x1xf32>
    %11 = arith.mulf %9, %10 : vector<16x1xf32>
    %12 = math.sqrt %11 : vector<16x1xf32>
    %cst_4 = arith.constant 9.99999997E-7 : f32
    %13 = vector.broadcast %cst_4 : f32 to vector<16x1xf32>
    %14 = arith.addf %12, %13 : vector<16x1xf32>
    %15 = tpu.reciprocal %14 : vector<16x1xf32> -> vector<16x1xf32>
    %c0_5 = arith.constant 0 : index
    %c0_6 = arith.constant 0 : index
    %16 = vector.load %arg2[%c0_5, %c0_6] : memref<1x128xf32, #tpu.memory_space<vmem>>, vector<1x128xf32>
    %c0_7 = arith.constant 0 : index
    %c0_8 = arith.constant 0 : index
    %17 = vector.load %arg3[%c0_7, %c0_8] : memref<1x128xf32, #tpu.memory_space<vmem>>, vector<1x128xf32>
    %18 = vector.broadcast %16 : vector<1x128xf32> to vector<16x128xf32>
    %19 = vector.broadcast %15 : vector<16x1xf32> to vector<16x128xf32>
    %20 = arith.mulf %18, %19 : vector<16x128xf32>
    %21 = vector.broadcast %7 : vector<16x1xf32> to vector<16x128xf32>
    %22 = arith.subf %0, %21 : vector<16x128xf32>
    %23 = arith.mulf %22, %20 : vector<16x128xf32>
    %24 = vector.broadcast %17 : vector<1x128xf32> to vector<16x128xf32>
    %25 = arith.addf %23, %24 : vector<16x128xf32>
    %c0_9 = arith.constant 0 : index
    %c0_10 = arith.constant 0 : index
    %26 = vector.load %arg4[%c0_9, %c0_10] : memref<16x128xf32, #tpu.memory_space<vmem>>, vector<16x128xf32>
    tpu.vector_store %arg4[%c0_9, %c0_10], %25 {strides = array<i32>} : memref<16x128xf32, #tpu.memory_space<vmem>>, vector<16x128xf32>,
    return
  }
  func.func @transform_0(%arg0: i32) -> (i32, i32) {
    %c0_i32 = arith.constant 0 : i32
    %c0_i32_0 = arith.constant 0 : i32
    return %arg0, %c0_i32 : i32, i32
  }
  func.func @transform_1(%arg0: i32) -> (i32, i32) {
    %c0_i32 = arith.constant 0 : i32
    %c0_i32_0 = arith.constant 0 : i32
    %c0_i32_1 = arith.constant 0 : i32
    return %c0_i32, %c0_i32_0 : i32, i32
  }
  func.func @transform_2(%arg0: i32) -> (i32, i32) {
    %c0_i32 = arith.constant 0 : i32
    %c0_i32_0 = arith.constant 0 : i32
    %c0_i32_1 = arith.constant 0 : i32
    return %c0_i32, %c0_i32_0 : i32, i32
  }
  func.func @transform_3(%arg0: i32) -> (i32, i32) {
    %c0_i32 = arith.constant 0 : i32
    %c0_i32_0 = arith.constant 0 : i32
    return %arg0, %c0_i32 : i32, i32
  }
}

</mosaic_0001>

<llo_original>
// kernel: tpu_custom_call.1
$region0: #{tpu_custom_call.1}
  #allocation0 [shape = 'u32[]', space=smem, size = 0x4, offset = 0x4, fixed_abs, tag = 'smem constant byte address 0x4 - core index']
  #allocation1 [shape = 'u32[144,128]{1,0:T(1,128)}', space=vmem, size = 0x12000, scoped, tag = 'internal scratch']
  %s0 = inlined_call_operand.hbm [shape: f32[16,128], index: 0, kind: input, shape index: {}]
  %s1 = inlined_call_operand.vmem [shape: f32[1,128], index: 1, kind: input, shape index: {}]
  %s2 = inlined_call_operand.vmem [shape: f32[1,128], index: 2, kind: input, shape index: {}]
  %s3 = inlined_call_operand.hbm [shape: f32[16,128], index: 3, kind: output, shape index: {}]
  %s4 = sld [smem:[#allocation0]]
  $region26: #{tpu_custom_call.1} parent=0
    _
  %s6 = ssub.s32 1, %s4
  %s7 = scalar_select 0, %s6, %s4
  $region1: #{tpu_custom_call.1} parent=0
    #allocation2 [shape = 'u8[8192]{0}', space=vmem, size = 0x2000, scoped, tag = 'input window, operand 0, single buffered']
    #allocation3 [shape = 's32[1]{0}', space=sflag, size = 0x4, scoped, tag = 'scoped memory for tpu_custom_call.1']
    #allocation4 [shape = 's32[1]{0}', space=sflag, size = 0x4, scoped, tag = 'scoped memory for tpu_custom_call.1']
    #allocation5 [shape = 'u8[8192]{0}', space=vmem, size = 0x2000, scoped, tag = 'output window, operand 0, single buffered']
    %8 = vsyncpa [#allocation3], 0
    %9 = vsyncpa [#allocation4], 0
    // Predicated region
    $region2: #{tpu_custom_call.1} parent=1 // pred_check
      _
    $region3: #{tpu_custom_call.1} parent=1 // pred_check_branch
      %11 = sbr.rel (0) target = $region5
    $region4: #{tpu_custom_call.1} parent=1 // pred_region
      %s13 = ssub.s32 256, 256
      %14 = vsyncadd [#allocation3], %s13
      %s15 = sshll.u32 [#allocation2], 4
      %s16 = int_to_ptr.vmem [resolvable:$true] %s15
      %21 = dma.hbm_to_vmem [thread:$0]  %s0, 256, %s16, [#allocation3], 128, 128, 8
    $region5: #{tpu_custom_call.1} parent=1 // pred_fallthru
      _
    // Predicated region
    $region6: #{tpu_custom_call.1} parent=1 // pred_check
      _
    $region7: #{tpu_custom_call.1} parent=1 // pred_check_branch
      %23 = sbr.rel (0) target = $region9
    $region8: #{tpu_custom_call.1} parent=1 // pred_region
      _
    $region9: #{tpu_custom_call.1} parent=1 // pred_fallthru
      _
    // Predicated region
    $region10: #{tpu_custom_call.1} parent=1 // pred_check
      _
    $region11: #{tpu_custom_call.1} parent=1 // pred_check_branch
      %25 = sbr.rel (0) target = $region13
    $region12: #{tpu_custom_call.1} parent=1 // pred_region
      _
    $region13: #{tpu_custom_call.1} parent=1 // pred_fallthru
      _
    // Predicated region
    $region14: #{tpu_custom_call.1} parent=1 // pred_check
      _
    $region15: #{tpu_custom_call.1} parent=1 // pred_check_branch
      %27 = sbr.rel (0) target = $region17
    $region16: #{tpu_custom_call.1} parent=1 // pred_region
      %28 = dma.done [#allocation3], 256
    $region17: #{tpu_custom_call.1} parent=1 // pred_fallthru
      _
    %v29 = vld [vmem:[#allocation2] sm:$0xff]
    %v30 = vld [vmem:[#allocation2 + $0x8] sm:$0xff]
    %31 = vadd.xlane.f32.xlu0 %v29
    %v32 = vpop.xlane.xlu0 %31
    %33 = vadd.xlane.f32.xlu0 %v30
    %v34 = vpop.xlane.xlu0 %33
    %v35 = vmul.f32 %v29, %v29
    %v36 = vmul.f32 %v30, %v30
    %37 = vadd.xlane.f32.xlu0 %v35
    %v38 = vpop.xlane.xlu0 %37
    %39 = vadd.xlane.f32.xlu0 %v36
    %v40 = vpop.xlane.xlu0 %39
    %v41 = vmul.f32 %v32, 0.0078125
    %v42 = vmul.f32 %v34, 0.0078125
    %v43 = vmul.f32 %v32, %v41
    %v44 = vmul.f32 %v34, %v42
    %v45 = vsub.f32 %v38, %v43
    %v46 = vsub.f32 %v40, %v44
    %v47 = vmul.f32 %v45, 0.007874016
    %v48 = vmul.f32 %v46, 0.007874016
    %v49 = vrsqrt.pop %v47
    %v50 = vmul.f32 %v47, %v49
    %vm51 = vcmp.eq.f32.partialorder %v47, inf
    %v52 = vsel %vm51, %v47, %v50
    %vm53 = vcmp.eq.f32.partialorder %v47, 0.0
    %v54 = vand.u32 %v47, 2147483648
    %v55 = vsel %vm53, %v54, %v52
    %v56 = vrsqrt.pop %v48
    %v57 = vmul.f32 %v48, %v56
    %vm58 = vcmp.eq.f32.partialorder %v48, inf
    %v59 = vsel %vm58, %v48, %v57
    %vm60 = vcmp.eq.f32.partialorder %v48, 0.0
    %v61 = vand.u32 %v48, 2147483648
    %v62 = vsel %vm60, %v61, %v59
    %v63 = vadd.f32 %v55, 1e-06
    %v64 = vadd.f32 %v62, 1e-06
    %v65 = vrcp.pop %v63
    %v66 = vrcp.pop %v64
    %v67 = vld [vmem:[%s1] sm:$0x1]
    %v68 = vld [vmem:[%s2] sm:$0x1]
    %v70 = vlaneseq
    %v71 = vshrl.u32 %v70, 7
    %v72 = vsub.s32 0, %v71
    %v73 = vrot.slane %v67, %v72
    %v75 = vmul.f32 %v73, %v65
    %v76 = vmul.f32 %v73, %v66
    %v77 = vsub.f32 %v29, %v41
    %v78 = vsub.f32 %v30, %v42
    %v79 = vmul.f32 %v77, %v75
    %v80 = vmul.f32 %v78, %v76
    %v82 = vlaneseq
    %v83 = vshrl.u32 %v82, 7
    %v84 = vsub.s32 0, %v83
    %v85 = vrot.slane %v68, %v84
    %v87 = vadd.f32 %v79, %v85
    %v88 = vadd.f32 %v80, %v85
    %89 = vst [vmem:[#allocation5] sm:$0xff] %v87
    %90 = vst [vmem:[#allocation5 + $0x8] sm:$0xff] %v88
    // Predicated region
    $region18: #{tpu_custom_call.1} parent=1 // pred_check
      _
    $region19: #{tpu_custom_call.1} parent=1 // pred_check_branch
      %92 = sbr.rel (0) target = $region21
    $region20: #{tpu_custom_call.1} parent=1 // pred_region
      %s94 = ssub.s32 256, 256
      %95 = vsyncadd [#allocation4], %s94
      %s96 = sshll.u32 [#allocation5], 4
      %s97 = int_to_ptr.vmem [resolvable:$true] %s96
      %102 = dma.vmem_to_hbm [thread:$0]  %s97, 256, %s3, [#allocation4], 128, 128, 8
    $region21: #{tpu_custom_call.1} parent=1 // pred_fallthru
      _
    // Predicated region
    $region22: #{tpu_custom_call.1} parent=1 // pred_check
      _
    $region23: #{tpu_custom_call.1} parent=1 // pred_check_branch
      %104 = sbr.rel (0) target = $region25
    $region24: #{tpu_custom_call.1} parent=1 // pred_region
      %105 = dma.done [#allocation4], 256
    $region25: #{tpu_custom_call.1} parent=1 // pred_fallthru
      _
    %106 = vsyncpa [#allocation3], 1
    %107 = vsyncpa [#allocation4], 1

</llo_original>
